<compile_context>
chip_gen: v7x
topology: tpu7x:2x2x1
jax: 0.10.0
libtpu: 0.0.40
codegen_flags: <defaults>
</compile_context>

<pallas_src>
import functools

import jax
import jax.numpy as jnp
from jax.experimental import pallas as pl
from jax.experimental.pallas import tpu as pltpu

# Module defaults.
GAMMA_NEG = 4.0
GAMMA_POS = 1.0
CLIP = 0.05
EPS = 1e-06

# Padding value for which the per-element loss is exactly 0 in f32:
# sigmoid(-30) ~ 9e-14 -> xs_neg rounds to 1 (then clamps to 1) -> log(1) = 0,
# and y = 0 kills the positive term.
_NEUTRAL_X = -30.0


def _integer_gammas(gamma_pos, gamma_neg):
    gp, gn = float(gamma_pos), float(gamma_neg)
    return gp >= 0 and gn >= 0 and gp == int(gp) and gn == int(gn)


def _int_pow(v, n):
    """v**n for a static non-negative integer n via repeated squaring (VPU only)."""
    assert n >= 0
    if n == 0:
        return jnp.ones_like(v)
    result = None
    base = v
    while n:
        if n & 1:
            result = base if result is None else result * base
        n >>= 1
        if n:
            base = base * base
    return result


def _asl_kernel(x_ref, y_ref, out_ref, *, gamma_neg, gamma_pos, clip, eps):
    x = x_ref[...].astype(jnp.float32)            # (tm, lanes)
    y = y_ref[...].astype(jnp.float32)            # (tm, lanes)

    # Numerically stable sigmoid built from a single EUP exp (no overflow).
    z = jnp.exp(-jnp.abs(x))
    inv = 1.0 / (1.0 + z)
    xs_pos = jnp.where(x >= 0, inv, z * inv)      # sigmoid(x)
    xs_neg = 1.0 - xs_pos

    if clip is not None and clip > 0:
        xs_neg = jnp.minimum(xs_neg + clip, 1.0)

    los_pos = y * jnp.log(jnp.maximum(xs_pos, eps))
    los_neg = (1.0 - y) * jnp.log(jnp.maximum(xs_neg, eps))
    loss = los_pos + los_neg

    if gamma_neg > 0 or gamma_pos > 0:            # trace-time branch
        pt = xs_pos * y + xs_neg * (1.0 - y)
        base = 1.0 - pt
        if _integer_gammas(gamma_pos, gamma_neg):
            # Defaults (1, 4): select + a few VPU multiplies instead of the
            # exp(g*log(.)) pair. Exact for binarized targets (y in {0, 1}),
            # which is what this loss expects.
            w = jnp.where(y > 0.5,
                          _int_pow(base, int(gamma_pos)),
                          _int_pow(base, int(gamma_neg)))
        else:
            w = jnp.power(base, gamma_pos * y + gamma_neg * (1.0 - y))
        loss = loss * w

    # Per-tile partial sum, reduced over lanes (XLU has slack; EUP is the
    # binding unit). Final tiny sum + negation happen in XLA in the wrapper.
    out_ref[...] = jnp.sum(loss, axis=1, keepdims=True)


def asymmetric_loss(x, y, *, gamma_neg=GAMMA_NEG, gamma_pos=GAMMA_POS,
                    clip=CLIP, eps=EPS, block_rows=256, lanes=512):
    """x, y: same shape (logits / binarized multi-label targets). Returns scalar."""
    assert x.shape == y.shape, (x.shape, y.shape)
    assert block_rows % 8 == 0 and lanes % 128 == 0
    total = x.size

    xf = jnp.ravel(x)
    yf = jnp.ravel(y)

    n_rows = pl.cdiv(total, lanes)
    n_rows = pl.cdiv(n_rows, 8) * 8               # sublane alignment
    tm = min(block_rows, n_rows)                  # shrink tile for tiny inputs
    n_rows = pl.cdiv(n_rows, tm) * tm             # whole number of tiles
    padded = n_rows * lanes

    # Loss-neutral padding (contributes exactly 0 to the sum).
    xf = jnp.pad(xf, (0, padded - total), constant_values=_NEUTRAL_X)
    yf = jnp.pad(yf, (0, padded - total), constant_values=0)
    x2 = xf.reshape(n_rows, lanes)
    y2 = yf.reshape(n_rows, lanes)

    n_tiles = n_rows // tm
    kernel = functools.partial(
        _asl_kernel, gamma_neg=float(gamma_neg), gamma_pos=float(gamma_pos),
        clip=clip, eps=float(eps))

    n_transcendentals = 3 if _integer_gammas(gamma_pos, gamma_neg) else 5
    cost = pl.CostEstimate(
        flops=16 * padded,
        transcendentals=n_transcendentals * padded,
        bytes_accessed=int(x2.size * x2.dtype.itemsize
                           + y2.size * y2.dtype.itemsize
                           + n_rows * 4),
    )

    partials = pl.pallas_call(
        kernel,
        out_shape=jax.ShapeDtypeStruct((n_rows, 1), jnp.float32),
        grid=(n_tiles,),
        in_specs=[
            pl.BlockSpec((tm, lanes), lambda i: (i, 0)),
            pl.BlockSpec((tm, lanes), lambda i: (i, 0)),
        ],
        out_specs=pl.BlockSpec((tm, 1), lambda i: (i, 0)),
        compiler_params=pltpu.CompilerParams(
            dimension_semantics=("parallel",)),
        cost_estimate=cost,
    )(x2, y2)

    return -jnp.sum(partials)


def _reference(x, y, gamma_neg=GAMMA_NEG, gamma_pos=GAMMA_POS,
               clip=CLIP, eps=EPS):
    """Pure-JAX transcription of AsymmetricLoss2.forward."""
    xf = x.astype(jnp.float32)
    yf = y.astype(jnp.float32)
    xs_pos = jax.nn.sigmoid(xf)
    xs_neg = 1.0 - xs_pos
    if clip is not None and clip > 0:
        xs_neg = jnp.minimum(xs_neg + clip, 1.0)
    loss = yf * jnp.log(jnp.maximum(xs_pos, eps)) + \
        (1.0 - yf) * jnp.log(jnp.maximum(xs_neg, eps))
    if gamma_neg > 0 or gamma_pos > 0:
        pt = xs_pos * yf + xs_neg * (1.0 - yf)
        g = gamma_pos * yf + gamma_neg * (1.0 - yf)
        loss = loss * jnp.power(1.0 - pt, g)
    return -jnp.sum(loss)


if __name__ == "__main__":
    key = jax.random.PRNGKey(0)
    kx, ky = jax.random.split(key)

    # Small multi-label example: (batch, channels, H, W) logits with
    # binarized targets of the same shape (forward is fully elementwise).
    shape = (2, 4, 16, 16)
    x = jax.random.normal(kx, shape, dtype=jnp.float32)
    y = jax.random.bernoulli(ky, p=0.3, shape=shape).astype(jnp.float32)

    out = asymmetric_loss(x, y)
    out = jax.block_until_ready(out)

    ref = _reference(x, y)
    assert jnp.allclose(out, ref, rtol=1e-4, atol=1e-4), (out, ref)

    print("KERNEL_OK")
</pallas_src>

<mosaic_0001>
module attributes {stable_mosaic.version = 11 : i64} {
  func.func @_asl_kernel(%arg0: i32, %arg1: memref<8x512xf32, #tpu.memory_space<vmem>>, %arg2: memref<8x512xf32, #tpu.memory_space<vmem>>, %arg3: memref<8x1xf32, #tpu.memory_space<vmem>>) attributes {dimension_semantics = [#tpu.dimension_semantics<parallel>], iteration_bounds = array<i64: 1>, scalar_prefetch = 0 : i64, scratch_operands = 0 : i64, tpu.core_type = #tpu.core_type<tc>, window_params = [{transform_indices = @transform_0, window_bounds = array<i64: 8, 512>}, {transform_indices = @transform_1, window_bounds = array<i64: 8, 512>}, {transform_indices = @transform_2, window_bounds = array<i64: 8, 1>}]} {
    %c0 = arith.constant 0 : index
    %c0_0 = arith.constant 0 : index
    %0 = vector.load %arg1[%c0, %c0_0] : memref<8x512xf32, #tpu.memory_space<vmem>>, vector<8x512xf32>
    %c0_1 = arith.constant 0 : index
    %c0_2 = arith.constant 0 : index
    %1 = vector.load %arg2[%c0_1, %c0_2] : memref<8x512xf32, #tpu.memory_space<vmem>>, vector<8x512xf32>
    %2 = math.absf %0 : vector<8x512xf32>
    %cst = arith.constant 0.000000e+00 : f32
    %3 = vector.broadcast %cst : f32 to vector<8x512xf32>
    %4 = arith.subf %3, %2 : vector<8x512xf32>
    %5 = math.exp %4 : vector<8x512xf32>
    %cst_3 = arith.constant 1.000000e+00 : f32
    %6 = vector.broadcast %cst_3 : f32 to vector<8x512xf32>
    %7 = arith.addf %6, %5 : vector<8x512xf32>
    %cst_4 = arith.constant 1.000000e+00 : f32
    %8 = vector.broadcast %cst_4 : f32 to vector<8x512xf32>
    %9 = arith.divf %8, %7 : vector<8x512xf32>
    %cst_5 = arith.constant 0.000000e+00 : f32
    %10 = vector.broadcast %cst_5 : f32 to vector<8x512xf32>
    %11 = arith.cmpf oge, %0, %10 : vector<8x512xf32>
    %12 = arith.mulf %5, %9 : vector<8x512xf32>
    %13 = arith.select %11, %9, %12 : vector<8x512xi1>, vector<8x512xf32>
    %cst_6 = arith.constant 1.000000e+00 : f32
    %14 = vector.broadcast %cst_6 : f32 to vector<8x512xf32>
    %15 = arith.subf %14, %13 : vector<8x512xf32>
    %cst_7 = arith.constant 5.000000e-02 : f32
    %16 = vector.broadcast %cst_7 : f32 to vector<8x512xf32>
    %17 = arith.addf %15, %16 : vector<8x512xf32>
    %cst_8 = arith.constant 1.000000e+00 : f32
    %18 = vector.broadcast %cst_8 : f32 to vector<8x512xf32>
    %19 = arith.minimumf %17, %18 : vector<8x512xf32>
    %cst_9 = arith.constant 9.99999997E-7 : f32
    %20 = vector.broadcast %cst_9 : f32 to vector<8x512xf32>
    %21 = arith.maximumf %13, %20 : vector<8x512xf32>
    %22 = math.log %21 : vector<8x512xf32>
    %23 = arith.mulf %1, %22 : vector<8x512xf32>
    %cst_10 = arith.constant 1.000000e+00 : f32
    %24 = vector.broadcast %cst_10 : f32 to vector<8x512xf32>
    %25 = arith.subf %24, %1 : vector<8x512xf32>
    %cst_11 = arith.constant 9.99999997E-7 : f32
    %26 = vector.broadcast %cst_11 : f32 to vector<8x512xf32>
    %27 = arith.maximumf %19, %26 : vector<8x512xf32>
    %28 = math.log %27 : vector<8x512xf32>
    %29 = arith.mulf %25, %28 : vector<8x512xf32>
    %30 = arith.addf %23, %29 : vector<8x512xf32>
    %31 = arith.mulf %13, %1 : vector<8x512xf32>
    %cst_12 = arith.constant 1.000000e+00 : f32
    %32 = vector.broadcast %cst_12 : f32 to vector<8x512xf32>
    %33 = arith.subf %32, %1 : vector<8x512xf32>
    %34 = arith.mulf %19, %33 : vector<8x512xf32>
    %35 = arith.addf %31, %34 : vector<8x512xf32>
    %cst_13 = arith.constant 1.000000e+00 : f32
    %36 = vector.broadcast %cst_13 : f32 to vector<8x512xf32>
    %37 = arith.subf %36, %35 : vector<8x512xf32>
    %cst_14 = arith.constant 5.000000e-01 : f32
    %38 = vector.broadcast %cst_14 : f32 to vector<8x512xf32>
    %39 = arith.cmpf ogt, %1, %38 : vector<8x512xf32>
    %40 = arith.mulf %37, %37 : vector<8x512xf32>
    %41 = arith.mulf %40, %40 : vector<8x512xf32>
    %42 = arith.select %39, %37, %41 : vector<8x512xi1>, vector<8x512xf32>
    %43 = arith.mulf %30, %42 : vector<8x512xf32>
    %cst_15 = arith.constant dense<0.000000e+00> : vector<8xf32>
    %44 = vector.multi_reduction <add>, %43, %cst_15 [1] : vector<8x512xf32> to vector<8xf32>
    %45 = vector.shape_cast %44 : vector<8xf32> to vector<8x1xf32>
    %c0_16 = arith.constant 0 : index
    %c0_17 = arith.constant 0 : index
    %46 = vector.load %arg3[%c0_16, %c0_17] : memref<8x1xf32, #tpu.memory_space<vmem>>, vector<8x1xf32>
    tpu.vector_store %arg3[%c0_16, %c0_17], %45 {strides = array<i32>} : memref<8x1xf32, #tpu.memory_space<vmem>>, vector<8x1xf32>,
    return
  }
  func.func @transform_0(%arg0: i32) -> (i32, i32) {
    %c0_i32 = arith.constant 0 : i32
    %c0_i32_0 = arith.constant 0 : i32
    return %arg0, %c0_i32 : i32, i32
  }
  func.func @transform_1(%arg0: i32) -> (i32, i32) {
    %c0_i32 = arith.constant 0 : i32
    %c0_i32_0 = arith.constant 0 : i32
    return %arg0, %c0_i32 : i32, i32
  }
  func.func @transform_2(%arg0: i32) -> (i32, i32) {
    %c0_i32 = arith.constant 0 : i32
    %c0_i32_0 = arith.constant 0 : i32
    return %arg0, %c0_i32 : i32, i32
  }
}

</mosaic_0001>

<llo_original>
// kernel: tpu_custom_call.1
$region0: #{tpu_custom_call.1}
  #allocation0 [shape = 'u32[]', space=smem, size = 0x4, offset = 0x4, fixed_abs, tag = 'smem constant byte address 0x4 - core index']
  #allocation1 [shape = 'u32[144,128]{1,0:T(1,128)}', space=vmem, size = 0x12000, scoped, tag = 'internal scratch']
  %s0 = inlined_call_operand.hbm [shape: f32[8,512], index: 0, kind: input, shape index: {}]
  %s1 = inlined_call_operand.hbm [shape: f32[8,512], index: 1, kind: input, shape index: {}]
  %s2 = inlined_call_operand.vmem [shape: f32[8,1], index: 2, kind: output, shape index: {}]
  %s3 = sld [smem:[#allocation0]]
  $region26: #{tpu_custom_call.1} parent=0
    _
  %s5 = ssub.s32 1, %s3
  %s6 = scalar_select 0, %s5, %s3
  $region1: #{tpu_custom_call.1} parent=0
    #allocation2 [shape = 'u8[16384]{0}', space=vmem, size = 0x4000, scoped, tag = 'input window, operand 0, single buffered']
    #allocation3 [shape = 's32[1]{0}', space=sflag, size = 0x4, scoped, tag = 'scoped memory for tpu_custom_call.1']
    #allocation4 [shape = 'u8[16384]{0}', space=vmem, size = 0x4000, scoped, tag = 'input window, operand 1, single buffered']
    #allocation5 [shape = 's32[1]{0}', space=sflag, size = 0x4, scoped, tag = 'scoped memory for tpu_custom_call.1']
    %7 = vsyncpa [#allocation3], 0
    %8 = vsyncpa [#allocation5], 0
    // Predicated region
    $region2: #{tpu_custom_call.1} parent=1 // pred_check
      _
    $region3: #{tpu_custom_call.1} parent=1 // pred_check_branch
      %10 = sbr.rel (0) target = $region5
    $region4: #{tpu_custom_call.1} parent=1 // pred_region
      %s12 = ssub.s32 512, 512
      %13 = vsyncadd [#allocation3], %s12
      %s15 = sshll.u32 [#allocation2], 4
      %s16 = int_to_ptr.vmem [resolvable:$true] %s15
      %18 = dma.hbm_to_vmem [thread:$0]  %s0, 512, %s16, [#allocation3]
    $region5: #{tpu_custom_call.1} parent=1 // pred_fallthru
      _
    // Predicated region
    $region6: #{tpu_custom_call.1} parent=1 // pred_check
      _
    $region7: #{tpu_custom_call.1} parent=1 // pred_check_branch
      %20 = sbr.rel (0) target = $region9
    $region8: #{tpu_custom_call.1} parent=1 // pred_region
      %s22 = ssub.s32 512, 512
      %23 = vsyncadd [#allocation5], %s22
      %s25 = sshll.u32 [#allocation4], 4
      %s26 = int_to_ptr.vmem [resolvable:$true] %s25
      %28 = dma.hbm_to_vmem [thread:$0]  %s1, 512, %s26, [#allocation5]
    $region9: #{tpu_custom_call.1} parent=1 // pred_fallthru
      _
    // Predicated region
    $region10: #{tpu_custom_call.1} parent=1 // pred_check
      _
    $region11: #{tpu_custom_call.1} parent=1 // pred_check_branch
      %30 = sbr.rel (0) target = $region13
    $region12: #{tpu_custom_call.1} parent=1 // pred_region
      %31 = dma.done [#allocation3], 512
    $region13: #{tpu_custom_call.1} parent=1 // pred_fallthru
      _
    // Predicated region
    $region14: #{tpu_custom_call.1} parent=1 // pred_check
      _
    $region15: #{tpu_custom_call.1} parent=1 // pred_check_branch
      %33 = sbr.rel (0) target = $region17
    $region16: #{tpu_custom_call.1} parent=1 // pred_region
      %34 = dma.done [#allocation5], 512
    $region17: #{tpu_custom_call.1} parent=1 // pred_fallthru
      _
    %v35 = vld [vmem:[#allocation2] sm:$0xff]
    %v36 = vld [vmem:[#allocation2 + $0x8] sm:$0xff]
    %v37 = vld [vmem:[#allocation2 + $0x10] sm:$0xff]
    %v38 = vld [vmem:[#allocation2 + $0x18] sm:$0xff]
    %v39 = vld [vmem:[#allocation4] sm:$0xff]
    %v40 = vld [vmem:[#allocation4 + $0x8] sm:$0xff]
    %v41 = vld [vmem:[#allocation4 + $0x10] sm:$0xff]
    %v42 = vld [vmem:[#allocation4 + $0x18] sm:$0xff]
    %v43 = vand.u32 2147483647, %v35
    %v44 = vand.u32 2147483647, %v36
    %v45 = vand.u32 2147483647, %v37
    %v46 = vand.u32 2147483647, %v38
    %v47 = vsub.f32 0.0, %v43
    %v48 = vsub.f32 0.0, %v44
    %v49 = vsub.f32 0.0, %v45
    %v50 = vsub.f32 0.0, %v46
    %v51 = vmul.f32 %v47, 1.442695
    %v52 = vpow.pop %v51
    %v53 = vmul.f32 %v48, 1.442695
    %v54 = vpow.pop %v53
    %v55 = vmul.f32 %v49, 1.442695
    %v56 = vpow.pop %v55
    %v57 = vmul.f32 %v50, 1.442695
    %v58 = vpow.pop %v57
    %v59 = vadd.f32 %v52, 1.0
    %v60 = vadd.f32 %v54, 1.0
    %v61 = vadd.f32 %v56, 1.0
    %v62 = vadd.f32 %v58, 1.0
    %v63 = vrcp.pop %v59
    %v64 = vmul.f32 1.0, %v63
    %v65 = vrcp.pop %v60
    %v66 = vmul.f32 1.0, %v65
    %v67 = vrcp.pop %v61
    %v68 = vmul.f32 1.0, %v67
    %v69 = vrcp.pop %v62
    %v70 = vmul.f32 1.0, %v69
    %vm71 = vcmp.ge.f32.partialorder %v35, 0.0
    %vm72 = vcmp.ge.f32.partialorder %v36, 0.0
    %vm73 = vcmp.ge.f32.partialorder %v37, 0.0
    %vm74 = vcmp.ge.f32.partialorder %v38, 0.0
    %v75 = vmul.f32 %v52, %v64
    %v76 = vmul.f32 %v54, %v66
    %v77 = vmul.f32 %v56, %v68
    %v78 = vmul.f32 %v58, %v70
    %v79 = vsel %vm71, %v64, %v75
    %v80 = vsel %vm72, %v66, %v76
    %v81 = vsel %vm73, %v68, %v77
    %v82 = vsel %vm74, %v70, %v78
    %v83 = vsub.f32 1.0, %v79
    %v84 = vsub.f32 1.0, %v80
    %v85 = vsub.f32 1.0, %v81
    %v86 = vsub.f32 1.0, %v82
    %v87 = vadd.f32 %v83, 0.05
    %v88 = vadd.f32 %v84, 0.05
    %v89 = vadd.f32 %v85, 0.05
    %v90 = vadd.f32 %v86, 0.05
    %v91 = vmin.f32 %v87, 1.0
    %v92 = vmin.f32 %v88, 1.0
    %v93 = vmin.f32 %v89, 1.0
    %v94 = vmin.f32 %v90, 1.0
    %v95 = vmax.f32 %v79, 1e-06
    %v96 = vmax.f32 %v80, 1e-06
    %v97 = vmax.f32 %v81, 1e-06
    %v98 = vmax.f32 %v82, 1e-06
    %v99 = vlog2.pop %v95
    %v100 = vmul.f32 %v99, 0.6931472
    %v101 = vlog2.pop %v96
    %v102 = vmul.f32 %v101, 0.6931472
    %v103 = vlog2.pop %v97
    %v104 = vmul.f32 %v103, 0.6931472
    %v105 = vlog2.pop %v98
    %v106 = vmul.f32 %v105, 0.6931472
    %v107 = vmul.f32 %v39, %v100
    %v108 = vmul.f32 %v40, %v102
    %v109 = vmul.f32 %v41, %v104
    %v110 = vmul.f32 %v42, %v106
    %v111 = vsub.f32 1.0, %v39
    %v112 = vsub.f32 1.0, %v40
    %v113 = vsub.f32 1.0, %v41
    %v114 = vsub.f32 1.0, %v42
    %v115 = vmax.f32 %v91, 1e-06
    %v116 = vmax.f32 %v92, 1e-06
    %v117 = vmax.f32 %v93, 1e-06
    %v118 = vmax.f32 %v94, 1e-06
    %v119 = vlog2.pop %v115
    %v120 = vmul.f32 %v119, 0.6931472
    %v121 = vlog2.pop %v116
    %v122 = vmul.f32 %v121, 0.6931472
    %v123 = vlog2.pop %v117
    %v124 = vmul.f32 %v123, 0.6931472
    %v125 = vlog2.pop %v118
    %v126 = vmul.f32 %v125, 0.6931472
    %v127 = vmul.f32 %v111, %v120
    %v128 = vmul.f32 %v112, %v122
    %v129 = vmul.f32 %v113, %v124
    %v130 = vmul.f32 %v114, %v126
    %v131 = vadd.f32 %v107, %v127
    %v132 = vadd.f32 %v108, %v128
    %v133 = vadd.f32 %v109, %v129
    %v134 = vadd.f32 %v110, %v130
    %v135 = vmul.f32 %v79, %v39
    %v136 = vmul.f32 %v80, %v40
    %v137 = vmul.f32 %v81, %v41
    %v138 = vmul.f32 %v82, %v42
    %v139 = vmul.f32 %v91, %v111
    %v140 = vmul.f32 %v92, %v112
    %v141 = vmul.f32 %v93, %v113
    %v142 = vmul.f32 %v94, %v114
    %v143 = vadd.f32 %v135, %v139
    %v144 = vadd.f32 %v136, %v140
    %v145 = vadd.f32 %v137, %v141
    %v146 = vadd.f32 %v138, %v142
    %v147 = vsub.f32 1.0, %v143
    %v148 = vsub.f32 1.0, %v144
    %v149 = vsub.f32 1.0, %v145
    %v150 = vsub.f32 1.0, %v146
    %vm151 = vcmp.gt.f32.partialorder %v39, 0.5
    %vm152 = vcmp.gt.f32.partialorder %v40, 0.5
    %vm153 = vcmp.gt.f32.partialorder %v41, 0.5
    %vm154 = vcmp.gt.f32.partialorder %v42, 0.5
    %v155 = vmul.f32 %v147, %v147
    %v156 = vmul.f32 %v148, %v148
    %v157 = vmul.f32 %v149, %v149
    %v158 = vmul.f32 %v150, %v150
    %v159 = vmul.f32 %v155, %v155
    %v160 = vmul.f32 %v156, %v156
    %v161 = vmul.f32 %v157, %v157
    %v162 = vmul.f32 %v158, %v158
    %v163 = vsel %vm151, %v147, %v159
    %v164 = vsel %vm152, %v148, %v160
    %v165 = vsel %vm153, %v149, %v161
    %v166 = vsel %vm154, %v150, %v162
    %v167 = vmul.f32 %v131, %v163
    %v168 = vmul.f32 %v132, %v164
    %v169 = vmul.f32 %v133, %v165
    %v170 = vmul.f32 %v134, %v166
    %v171 = vadd.f32 %v167, %v168
    %v172 = vadd.f32 %v171, %v169
    %v173 = vadd.f32 %v172, %v170
    %174 = vadd.xlane.f32.xlu0 %v173
    %v175 = vpop.xlane.xlu0 %174
    %vm176 = vcmask 7168
    %177 = vst.msk [vmem:[%s2] sm:$0xff] %vm176, %v175
    // Predicated region
    $region18: #{tpu_custom_call.1} parent=1 // pred_check
      _
    $region19: #{tpu_custom_call.1} parent=1 // pred_check_branch
      %179 = sbr.rel (0) target = $region21
    $region20: #{tpu_custom_call.1} parent=1 // pred_region
      _
    $region21: #{tpu_custom_call.1} parent=1 // pred_fallthru
      _
    // Predicated region
    $region22: #{tpu_custom_call.1} parent=1 // pred_check
      _
    $region23: #{tpu_custom_call.1} parent=1 // pred_check_branch
      %181 = sbr.rel (0) target = $region25
    $region24: #{tpu_custom_call.1} parent=1 // pred_region
      _
    $region25: #{tpu_custom_call.1} parent=1 // pred_fallthru
      _
    %182 = vsyncpa [#allocation3], 1
    %183 = vsyncpa [#allocation5], 1

</llo_original>
